<compile_context>
chip_gen: v6e
topology: v6e:2x2x1
jax: 0.10.0
libtpu: 0.0.40
codegen_flags: <defaults>
</compile_context>

<pallas_src>
import functools
import math

import jax
import jax.numpy as jnp
from jax import lax
from jax.experimental import pallas as pl
from jax.experimental.pallas import tpu as pltpu


def _input_embedding_kernel(S, TS, V, GR, chunk_axis,
                            ids_ref, emb_ref, pe_ref, out_ref):
    """One grid step: gather TS embedding rows, fuse the PE add, store slabs.

    ids_ref: SMEM [B*S] int32 (scalar prefetch)
    emb_ref: VMEM [V, D]   (resident: constant block index, single-buffered)
    pe_ref:  VMEM [TS, D]  (positional-encoding rows for this sequence chunk)
    out_ref: VMEM [1, TS, D]
    """
    sc = pl.program_id(chunk_axis)       # sequence-chunk index
    b = pl.program_id(1 - chunk_axis)    # batch index
    base = b * S + sc * TS               # offset of this chunk in the flat ids

    num_groups = TS // GR                # static

    def gather_row_f32(token_slot):
        tok = ids_ref[base + token_slot]
        # Clamp: data-dependent VMEM indexing has no hardware bounds check.
        # (PyTorch nn.Embedding would raise on OOB ids; we clamp instead.)
        tok = jnp.minimum(jnp.maximum(tok, 0), V - 1)
        return emb_ref[pl.ds(tok, 1), :].astype(jnp.float32)

    def do_group(g, carry):
        g0 = pl.multiple_of(g * GR, GR)             # aligned store offset
        # Static unroll: GR dynamic single-row loads from the resident table.
        rows = [gather_row_f32(g0 + t) for t in range(GR)]
        slab = jnp.concatenate(rows, axis=0)        # (GR, D) f32
        # Fused positional-encoding add (f32 math, single cast on store).
        slab = slab + pe_ref[pl.ds(g0, GR), :].astype(jnp.float32)
        # One unmasked, sublane-dense store per group.
        out_ref[0, pl.ds(g0, GR), :] = slab.astype(out_ref.dtype)
        return carry

    if num_groups > 0:
        lax.fori_loop(0, num_groups, do_group, 0)

    # Remainder (< GR tokens) only when TS is a full, non-multiple sequence.
    for t in range(num_groups * GR, TS):
        row = gather_row_f32(t) + pe_ref[pl.ds(t, 1), :].astype(jnp.float32)
        out_ref[0, pl.ds(t, 1), :] = row.astype(out_ref.dtype)


def _row_multiple(dtype):
    """Rows per packed sublane tile for this dtype (8 f32 / 16 bf16 / 32 int8)."""
    return {4: 8, 2: 16, 1: 32}.get(jnp.dtype(dtype).itemsize, 8)


def _pick_chunk(seq_len, mult, target=512):
    """Largest multiple-of-`mult` divisor of seq_len <= target (else full seq)."""
    if seq_len <= target:
        return seq_len                    # full dim -> always a legal block
    for ts in range(target - (target % mult), mult - 1, -mult):
        if seq_len % ts == 0:
            return ts
    return seq_len                        # fallback: one chunk = whole sequence


def _vmem_cap_bytes():
    """Per-generation scoped-VMEM cap: ~3/4 of physical VMEM, at most 100 MiB
    (~96 MiB on the 128 MiB v5e/v6e parts, ~48 MiB on v7x's 64 MiB)."""
    phys = None
    try:
        phys = getattr(pltpu.get_tpu_info(), "vmem_capacity_bytes", None)
    except Exception:
        phys = None
    if not phys:
        phys = 128 * 2**20                # assume a 128 MiB part if unknown
    return int(min((phys * 3) // 4, 100 * 2**20))


def input_embedding(ids, emb_table, pe, *, chunk_tokens=None):
    """ids: [B, S] int; emb_table: [V, D]; pe: [max_len, D] -> [B, S, D]."""
    B, S = ids.shape
    V, D = emb_table.shape
    assert pe.shape[1] == D and pe.shape[0] >= S

    out_dtype = emb_table.dtype
    GR = _row_multiple(out_dtype)         # packed group size for the stores
    TS = chunk_tokens or _pick_chunk(S, GR)
    assert S % TS == 0
    num_chunks = S // TS

    # ids go in via scalar prefetch (flat 1-D avoids 2-D SMEM padding); 1-D
    # SMEM arrays pad to the next power of two, so keep a conservative budget.
    ids_smem_bytes = pl.next_power_of_2(4 * B * S)
    assert ids_smem_bytes <= 512 * 1024, (
        "token-id scalar prefetch would exceed the SMEM budget; "
        "TODO(synk): pass ids as a per-chunk blocked SMEM input instead")
    ids_flat = ids.reshape(-1).astype(jnp.int32)
    pe_s = pe[:S]

    # Grid ordering: lead with the larger parallel axis so v7x's two
    # TensorCores both get work even when one extent is 1-2.
    chunk_leading = num_chunks >= B
    if chunk_leading:
        grid = (num_chunks, B)
        chunk_axis = 0
        out_map = lambda sc, b, ids_ref: (b, sc, 0)
        pe_map = lambda sc, b, ids_ref: (sc, 0)     # independent of b -> reused
    else:
        grid = (B, num_chunks)
        chunk_axis = 1
        out_map = lambda b, sc, ids_ref: (b, sc, 0)
        pe_map = lambda b, sc, ids_ref: (sc, 0)

    table_map = lambda i0, i1, ids_ref: (0, 0)      # constant -> DMA'd once
    try:
        # Constant block index => pipelining buys nothing; single-buffer the
        # resident table to halve its VMEM footprint (key on v7x's 64 MiB).
        table_spec = pl.BlockSpec((V, D), table_map, pipeline_mode=pl.Buffered(1))
        table_bufs = 1
    except TypeError:                               # older jax: no pipeline_mode
        table_spec = pl.BlockSpec((V, D), table_map)
        table_bufs = 2

    # VMEM budget: resident table + double-buffered out/pe chunks + slack.
    t_item = jnp.dtype(out_dtype).itemsize
    pe_item = jnp.dtype(pe_s.dtype).itemsize
    need = (table_bufs * V * D * t_item
            + 2 * TS * D * t_item
            + 2 * TS * D * pe_item
            + (1 << 20))
    cap = _vmem_cap_bytes()
    if need > cap:
        # Explicit failure instead of silently clamping below `need`.
        # TODO(synk): large-vocab fallback — memory_space=pl.ANY table + manual
        # make_async_copy row gather into a double-buffered VMEM scratch.
        raise NotImplementedError(
            f"resident embedding table needs ~{need >> 20} MiB VMEM, above this "
            f"chip's ~{cap >> 20} MiB budget; DMA-gather path not implemented")
    vmem_limit = int(min(max(need, 16 * 2**20), cap))

    kernel = functools.partial(_input_embedding_kernel, S, TS, V, GR, chunk_axis)

    grid_spec = pltpu.PrefetchScalarGridSpec(
        num_scalar_prefetch=1,
        grid=grid,
        in_specs=[
            table_spec,                          # whole table, VMEM-resident
            pl.BlockSpec((TS, D), pe_map),       # PE rows for this chunk
        ],
        out_specs=pl.BlockSpec((1, TS, D), out_map),
    )

    return pl.pallas_call(
        kernel,
        out_shape=jax.ShapeDtypeStruct((B, S, D), out_dtype),
        grid_spec=grid_spec,
        compiler_params=pltpu.CompilerParams(
            dimension_semantics=("parallel", "parallel"),
            vmem_limit_bytes=vmem_limit,
        ),
    )(ids_flat, emb_table, pe_s)


def make_positional_encoding(d_model, max_len):
    """Matches the PyTorch PositionalEncoding buffer (without the batch dim)."""
    position = jnp.arange(0, max_len, dtype=jnp.float32)[:, None]          # [L, 1]
    div_term = jnp.exp(jnp.arange(0, d_model, 2, dtype=jnp.float32)
                       * (-math.log(10000.0) / d_model))                   # [D/2]
    pe = jnp.zeros((max_len, d_model), dtype=jnp.float32)
    pe = pe.at[:, 0::2].set(jnp.sin(position * div_term))
    pe = pe.at[:, 1::2].set(jnp.cos(position * div_term))
    return pe


if __name__ == "__main__":
    B, S = 2, 8
    vocab_size, d_model, max_len = 64, 128, 32

    key = jax.random.PRNGKey(0)
    k_emb, k_ids = jax.random.split(key)

    # Deterministic synthetic parameters (nn.Embedding weight ~ N(0, 1)).
    emb_table = jax.random.normal(k_emb, (vocab_size, d_model), dtype=jnp.float32)
    pe = make_positional_encoding(d_model, max_len)
    ids = jax.random.randint(k_ids, (B, S), 0, vocab_size, dtype=jnp.int32)

    out = input_embedding(ids, emb_table, pe)
    out = jax.block_until_ready(out)

    # Reference: embedding lookup + positional encoding (pure JAX).
    ref = jnp.take(emb_table, ids, axis=0) + pe[None, :S, :]
    assert out.shape == (B, S, d_model)
    assert jnp.allclose(out, ref, atol=1e-6, rtol=1e-6)

    print("KERNEL_OK")
</pallas_src>

<mosaic_0001>
module attributes {stable_mosaic.version = 11 : i64} {
  func.func @_input_embedding_kernel(%arg0: i32, %arg1: i32, %arg2: memref<16xi32, #tpu.memory_space<smem>>, %arg3: memref<64x128xf32, #tpu.memory_space<vmem>>, %arg4: memref<8x128xf32, #tpu.memory_space<vmem>>, %arg5: memref<1x8x128xf32, #tpu.memory_space<vmem>>) attributes {dimension_semantics = [#tpu.dimension_semantics<parallel>, #tpu.dimension_semantics<parallel>], iteration_bounds = array<i64: 2, 1>, scalar_prefetch = 1 : i64, scratch_operands = 0 : i64, tpu.core_type = #tpu.core_type<tc>, window_params = [{pipeline_mode = #tpu.pipeline_mode<synchronous>, transform_indices = @transform_0, window_bounds = array<i64: 64, 128>}, {transform_indices = @transform_1, window_bounds = array<i64: 8, 128>}, {transform_indices = @transform_2, window_bounds = array<i64: 1, 8, 128>}]} {
    %c8_i32 = arith.constant 8 : i32
    %0 = arith.muli %arg0, %c8_i32 : i32
    %c8_i32_0 = arith.constant 8 : i32
    %1 = arith.muli %arg1, %c8_i32_0 : i32
    %2 = arith.addi %0, %1 : i32
    %c0_i32 = arith.constant 0 : i32
    %c8_i32_1 = arith.constant 8 : i32
    %3 = arith.muli %c0_i32, %c8_i32_1 : i32
    %4 = tpu.assume_multiple %3, 8 : i32
    %c0_i32_2 = arith.constant 0 : i32
    %5 = arith.addi %4, %c0_i32_2 : i32
    %6 = arith.addi %2, %5 : i32
    %7 = arith.index_cast %6 : i32 to index
    %8 = memref.load %arg2[%7] : memref<16xi32, #tpu.memory_space<smem>>
    %c0_i32_3 = arith.constant 0 : i32
    %9 = arith.maxsi %8, %c0_i32_3 : i32
    %c63_i32 = arith.constant 63 : i32
    %10 = arith.minsi %9, %c63_i32 : i32
    %11 = arith.index_cast %10 : i32 to index
    %c0 = arith.constant 0 : index
    %12 = vector.load %arg3[%11, %c0] : memref<64x128xf32, #tpu.memory_space<vmem>>, vector<1x128xf32>
    %c1_i32 = arith.constant 1 : i32
    %13 = arith.addi %4, %c1_i32 : i32
    %14 = arith.addi %2, %13 : i32
    %15 = arith.index_cast %14 : i32 to index
    %16 = memref.load %arg2[%15] : memref<16xi32, #tpu.memory_space<smem>>
    %c0_i32_4 = arith.constant 0 : i32
    %17 = arith.maxsi %16, %c0_i32_4 : i32
    %c63_i32_5 = arith.constant 63 : i32
    %18 = arith.minsi %17, %c63_i32_5 : i32
    %19 = arith.index_cast %18 : i32 to index
    %c0_6 = arith.constant 0 : index
    %20 = vector.load %arg3[%19, %c0_6] : memref<64x128xf32, #tpu.memory_space<vmem>>, vector<1x128xf32>
    %c2_i32 = arith.constant 2 : i32
    %21 = arith.addi %4, %c2_i32 : i32
    %22 = arith.addi %2, %21 : i32
    %23 = arith.index_cast %22 : i32 to index
    %24 = memref.load %arg2[%23] : memref<16xi32, #tpu.memory_space<smem>>
    %c0_i32_7 = arith.constant 0 : i32
    %25 = arith.maxsi %24, %c0_i32_7 : i32
    %c63_i32_8 = arith.constant 63 : i32
    %26 = arith.minsi %25, %c63_i32_8 : i32
    %27 = arith.index_cast %26 : i32 to index
    %c0_9 = arith.constant 0 : index
    %28 = vector.load %arg3[%27, %c0_9] : memref<64x128xf32, #tpu.memory_space<vmem>>, vector<1x128xf32>
    %c3_i32 = arith.constant 3 : i32
    %29 = arith.addi %4, %c3_i32 : i32
    %30 = arith.addi %2, %29 : i32
    %31 = arith.index_cast %30 : i32 to index
    %32 = memref.load %arg2[%31] : memref<16xi32, #tpu.memory_space<smem>>
    %c0_i32_10 = arith.constant 0 : i32
    %33 = arith.maxsi %32, %c0_i32_10 : i32
    %c63_i32_11 = arith.constant 63 : i32
    %34 = arith.minsi %33, %c63_i32_11 : i32
    %35 = arith.index_cast %34 : i32 to index
    %c0_12 = arith.constant 0 : index
    %36 = vector.load %arg3[%35, %c0_12] : memref<64x128xf32, #tpu.memory_space<vmem>>, vector<1x128xf32>
    %c4_i32 = arith.constant 4 : i32
    %37 = arith.addi %4, %c4_i32 : i32
    %38 = arith.addi %2, %37 : i32
    %39 = arith.index_cast %38 : i32 to index
    %40 = memref.load %arg2[%39] : memref<16xi32, #tpu.memory_space<smem>>
    %c0_i32_13 = arith.constant 0 : i32
    %41 = arith.maxsi %40, %c0_i32_13 : i32
    %c63_i32_14 = arith.constant 63 : i32
    %42 = arith.minsi %41, %c63_i32_14 : i32
    %43 = arith.index_cast %42 : i32 to index
    %c0_15 = arith.constant 0 : index
    %44 = vector.load %arg3[%43, %c0_15] : memref<64x128xf32, #tpu.memory_space<vmem>>, vector<1x128xf32>
    %c5_i32 = arith.constant 5 : i32
    %45 = arith.addi %4, %c5_i32 : i32
    %46 = arith.addi %2, %45 : i32
    %47 = arith.index_cast %46 : i32 to index
    %48 = memref.load %arg2[%47] : memref<16xi32, #tpu.memory_space<smem>>
    %c0_i32_16 = arith.constant 0 : i32
    %49 = arith.maxsi %48, %c0_i32_16 : i32
    %c63_i32_17 = arith.constant 63 : i32
    %50 = arith.minsi %49, %c63_i32_17 : i32
    %51 = arith.index_cast %50 : i32 to index
    %c0_18 = arith.constant 0 : index
    %52 = vector.load %arg3[%51, %c0_18] : memref<64x128xf32, #tpu.memory_space<vmem>>, vector<1x128xf32>
    %c6_i32 = arith.constant 6 : i32
    %53 = arith.addi %4, %c6_i32 : i32
    %54 = arith.addi %2, %53 : i32
    %55 = arith.index_cast %54 : i32 to index
    %56 = memref.load %arg2[%55] : memref<16xi32, #tpu.memory_space<smem>>
    %c0_i32_19 = arith.constant 0 : i32
    %57 = arith.maxsi %56, %c0_i32_19 : i32
    %c63_i32_20 = arith.constant 63 : i32
    %58 = arith.minsi %57, %c63_i32_20 : i32
    %59 = arith.index_cast %58 : i32 to index
    %c0_21 = arith.constant 0 : index
    %60 = vector.load %arg3[%59, %c0_21] : memref<64x128xf32, #tpu.memory_space<vmem>>, vector<1x128xf32>
    %c7_i32 = arith.constant 7 : i32
    %61 = arith.addi %4, %c7_i32 : i32
    %62 = arith.addi %2, %61 : i32
    %63 = arith.index_cast %62 : i32 to index
    %64 = memref.load %arg2[%63] : memref<16xi32, #tpu.memory_space<smem>>
    %c0_i32_22 = arith.constant 0 : i32
    %65 = arith.maxsi %64, %c0_i32_22 : i32
    %c63_i32_23 = arith.constant 63 : i32
    %66 = arith.minsi %65, %c63_i32_23 : i32
    %67 = arith.index_cast %66 : i32 to index
    %c0_24 = arith.constant 0 : index
    %68 = vector.load %arg3[%67, %c0_24] : memref<64x128xf32, #tpu.memory_space<vmem>>, vector<1x128xf32>
    %69 = tpu.concatenate %12, %20, %28, %36, %44, %52, %60, %68 in 0 : vector<1x128xf32>, vector<1x128xf32>, vector<1x128xf32>, vector<1x128xf32>, vector<1x128xf32>, vector<1x128xf32>, vector<1x128xf32>, vector<1x128xf32> -> vector<8x128xf32>
    %70 = arith.index_cast %4 : i32 to index
    %c0_25 = arith.constant 0 : index
    %71 = vector.load %arg4[%70, %c0_25] : memref<8x128xf32, #tpu.memory_space<vmem>>, vector<8x128xf32>
    %72 = arith.addf %69, %71 : vector<8x128xf32>
    %c0_26 = arith.constant 0 : index
    %73 = arith.index_cast %4 : i32 to index
    %c0_27 = arith.constant 0 : index
    %74 = vector.load %arg5[%c0_26, %73, %c0_27] : memref<1x8x128xf32, #tpu.memory_space<vmem>>, vector<1x8x128xf32>
    %75 = vector.shape_cast %74 : vector<1x8x128xf32> to vector<8x128xf32>
    %76 = vector.shape_cast %72 : vector<8x128xf32> to vector<1x8x128xf32>
    tpu.vector_store %arg5[%c0_26, %73, %c0_27], %76 {strides = array<i32>} : memref<1x8x128xf32, #tpu.memory_space<vmem>>, vector<1x8x128xf32>,
    %c1_i32_28 = arith.constant 1 : i32
    return
  }
  func.func @transform_0(%arg0: i32, %arg1: i32, %arg2: memref<16xi32, #tpu.memory_space<smem>>) -> (i32, i32) {
    %c0_i32 = arith.constant 0 : i32
    %c0_i32_0 = arith.constant 0 : i32
    %c0_i32_1 = arith.constant 0 : i32
    return %c0_i32, %c0_i32_0 : i32, i32
  }
  func.func @transform_1(%arg0: i32, %arg1: i32, %arg2: memref<16xi32, #tpu.memory_space<smem>>) -> (i32, i32) {
    %c0_i32 = arith.constant 0 : i32
    %c0_i32_0 = arith.constant 0 : i32
    return %arg1, %c0_i32 : i32, i32
  }
  func.func @transform_2(%arg0: i32, %arg1: i32, %arg2: memref<16xi32, #tpu.memory_space<smem>>) -> (i32, i32, i32) {
    %c0_i32 = arith.constant 0 : i32
    %c0_i32_0 = arith.constant 0 : i32
    return %arg0, %arg1, %c0_i32 : i32, i32, i32
  }
}

</mosaic_0001>

<llo_original>
// kernel: tpu_custom_call.1
$region0: #{tpu_custom_call.1}
  #allocation0 [shape = 'u32[]', space=smem, size = 0x4, offset = 0x4, fixed_abs, tag = 'smem constant byte address 0x4 - core index']
  #allocation1 [shape = 'u32[144,128]{1,0:T(1,128)}', space=vmem, size = 0x12000, scoped, tag = 'internal scratch']
  #allocation2 [shape = 's32[1]{0}', space=sflag, size = 0x4, scoped, tag = 'scoped memory for tpu_custom_call.1']
  #allocation3 [shape = 'u8[512]{0}', space=smem, size = 0x200, scoped, tag = 'prefetched SMEM operand 0']
  %s0 = inlined_call_operand.hbm [shape: s32[16], index: 0, kind: input, shape index: {}]
  %s1 = inlined_call_operand.hbm [shape: f32[64,128], index: 1, kind: input, shape index: {}]
  %s2 = inlined_call_operand.hbm [shape: f32[8,128], index: 2, kind: input, shape index: {}]
  %s3 = inlined_call_operand.hbm [shape: f32[2,8,128], index: 3, kind: output, shape index: {}]
  %s4 = sld [smem:[#allocation0]]
  $region49: #{tpu_custom_call.1} parent=0
    _
  %s6 = ssub.s32 1, %s4
  %s7 = scalar_select 0, %s6, %s4
  %9 = dma.hbm_to_smem %s0, 16, [#allocation3], [#allocation2]
  %10 = dma.done [#allocation2], 16
  %11 = sfence
  $region1: #{tpu_custom_call.1} parent=0
    #allocation4 [shape = 'u8[32768]{0}', space=vmem, size = 0x8000, scoped, tag = 'input window, operand 1, single buffered']
    #allocation5 [shape = 's32[2]{0}', space=sflag, size = 0x8, scoped, tag = 'scoped memory for tpu_custom_call.1']
    #allocation6 [shape = 's32[2]{0}', space=sflag, size = 0x8, scoped, tag = 'scoped memory for tpu_custom_call.1']
    #allocation7 [shape = 'u8[4096]{0}', space=vmem, size = 0x1000, scoped, tag = 'input window, operand 2, single buffered']
    #allocation8 [shape = 's32[1]{0}', space=sflag, size = 0x4, scoped, tag = 'scoped memory for tpu_custom_call.1']
    #allocation9 [shape = 'u8[8192]{0}', space=vmem, size = 0x2000, scoped, tag = 'output window, operand 0']
    %12 = vsyncpa [#allocation5], 0
    %13 = vsyncpa [#allocation8], 0
    %14 = vsyncpa [#allocation6], 0
    %s15 = scalar_lea.sflag [#allocation6], 1
    %16 = vsyncpa %s15, 0
    loop: start=0, step=1, limit=4
    $region2: #{tpu_custom_call.1} parent=1 // loop_pre_header
      _
    $region3: #{tpu_custom_call.1} parent=1 // loop_header
      %s18 = sphi 0, %s22
      %p19 = scmp.ge.s32.totalorder %s18, 4
      %s25 = sphi 0, %s37
      %s26 = sphi 0, %s33
      %s27 = sphi 0, %s25
      %s28 = sphi 0, %s26
      %s29 = sphi 0, %s27
      %s30 = sphi 0, %s28
      %s38 = sphi 0, %s38
      %s40 = sphi 0, %s38
      %s41 = sphi 0, %s40
      %s55 = sphi 0, %s41
      %s61 = sphi 0, %s63
      %s64 = sphi 0, %s61
      %s65 = sphi 0, %s64
      %s81 = sphi 0, %s65
      %s89 = sphi 0, %s91
      %s92 = sphi 0, %s89
      %s93 = sphi 0, %s92
      %s109 = sphi 0, %s93
    $region4: #{tpu_custom_call.1} parent=1 // loop_header_branch
      %21 = sbr.rel (%p19) target = $region8
    $region5: #{tpu_custom_call.1} parent=1 // loop_body
      %s23 = ssub.s32 %s18, 1
      %s24 = ssub.s32 %s18, 2
      %s31 = sadd.s32 1, %s26
      %p32 = scmp.ge.s32.totalorder %s31, 1
      %s33 = scalar_select %p32, 0, %s31
      %s34 = sadd.s32 1, %s25
      %s35 = scalar_select %p32, %s34, %s25
      %p36 = scmp.ge.s32.totalorder %s35, 2
      %s37 = scalar_select %p36, 0, %s35
      %s39 = sadd.s32 %s38, 1
      %p42 = scmp.eq.s32.totalorder %s18, 1
      %p43 = scmp.ne.s32.totalorder %s38, %s40
      %p44 = scmp.eq.s32.totalorder %s18, 0
      %p45 = por %p43, %p44
      %p46 = scmp.ne.s32.totalorder %s38, %s40
      %p47 = scmp.eq.s32.totalorder %s23, 1
      %p48 = por %p46, %p47
      %p49 = scmp.ne.s32.totalorder %s40, %s41
      %p50 = scmp.eq.s32.totalorder %s23, 0
      %p51 = por %p49, %p50
      %p52 = scmp.ne.s32.totalorder %s40, %s41
      %p53 = scmp.eq.s32.totalorder %s24, 1
      %p54 = por %p52, %p53
      %p56 = scmp.ne.s32.totalorder %s41, %s55
      %p57 = scmp.eq.s32.totalorder %s24, 0
      %p58 = por %p56, %p57
      %s59 = ssub.s32 %s26, %s33
      %p60 = scmp.eq.s32.totalorder %s59, 0
      %s62 = sadd.s32 %s61, 1
      %s63 = scalar_select %p60, %s61, %s62
      %p66 = pneg %p60
      %p67 = scmp.eq.s32.totalorder %s18, 1
      %p68 = por %p66, %p67
      %p69 = scmp.ne.s32.totalorder %s61, %s64
      %p70 = scmp.eq.s32.totalorder %s18, 0
      %p71 = por %p69, %p70
      %p72 = scmp.ne.s32.totalorder %s61, %s64
      %p73 = scmp.eq.s32.totalorder %s23, 1
      %p74 = por %p72, %p73
      %p75 = scmp.ne.s32.totalorder %s64, %s65
      %p76 = scmp.eq.s32.totalorder %s23, 0
      %p77 = por %p75, %p76
      %p78 = scmp.ne.s32.totalorder %s64, %s65
      %p79 = scmp.eq.s32.totalorder %s24, 1
      %p80 = por %p78, %p79
      %p82 = scmp.ne.s32.totalorder %s65, %s81
      %p83 = scmp.eq.s32.totalorder %s24, 0
      %p84 = por %p82, %p83
      %s85 = ssub.s32 %s25, %s37
      %s86 = ssub.s32 %s26, %s33
      %s87 = sor.u32 %s85, %s86
      %p88 = scmp.eq.s32.totalorder %s87, 0
      %s90 = sadd.s32 %s89, 1
      %s91 = scalar_select %p88, %s89, %s90
      %p94 = pneg %p88
      %p95 = scmp.eq.s32.totalorder %s18, 1
      %p96 = por %p94, %p95
      %p97 = scmp.ne.s32.totalorder %s89, %s92
      %p98 = scmp.eq.s32.totalorder %s18, 0
      %p99 = por %p97, %p98
      %p100 = scmp.ne.s32.totalorder %s89, %s92
      %p101 = scmp.eq.s32.totalorder %s23, 1
      %p102 = por %p100, %p101
      %p103 = scmp.ne.s32.totalorder %s92, %s93
      %p104 = scmp.eq.s32.totalorder %s23, 0
      %p105 = por %p103, %p104
      %p106 = scmp.ne.s32.totalorder %s92, %s93
      %p107 = scmp.eq.s32.totalorder %s24, 1
      %p108 = por %p106, %p107
      %p110 = scmp.ne.s32.totalorder %s93, %s109
      %p111 = scmp.eq.s32.totalorder %s24, 0
      %p112 = por %p110, %p111
      %p113 = scmp.le.s32.totalorder 1, %s18
      %p114 = scmp.lt.s32.totalorder %s18, 3
      %p115 = pnand %p113, %p114
      %p116 = pneg %p115
      // Predicated region
      $region9: #{tpu_custom_call.1} parent=5 // pred_check
        _
      $region10: #{tpu_custom_call.1} parent=5 // pred_check_branch
        %118 = sbr.rel (%p115) target = $region12
      $region11: #{tpu_custom_call.1} parent=5 // pred_region
        %s119 = ssub.s32 %s18, 1
        // Predicated region
        $region13: #{tpu_custom_call.1} parent=11 // pred_check
          %p120 = pneg %p51
        $region14: #{tpu_custom_call.1} parent=11 // pred_check_branch
          %122 = sbr.rel (%p120) target = $region16
        $region15: #{tpu_custom_call.1} parent=11 // pred_region
          %s124 = ssub.s32 1024, 1024
          %125 = vsyncadd [#allocation5], %s124
          %s126 = sshll.u32 [#allocation4], 4
          %s127 = int_to_ptr.vmem [resolvable:$true] %s126
          %132 = dma.hbm_to_vmem [thread:$0]  %s1, 1024, %s127, [#allocation5], 128, 128, 8
        $region16: #{tpu_custom_call.1} parent=11 // pred_fallthru
          _
        // Predicated region
        $region17: #{tpu_custom_call.1} parent=11 // pred_check
          %p133 = pneg %p77
        $region18: #{tpu_custom_call.1} parent=11 // pred_check_branch
          %135 = sbr.rel (%p133) target = $region20
        $region19: #{tpu_custom_call.1} parent=11 // pred_region
          %s137 = ssub.s32 128, 128
          %138 = vsyncadd [#allocation8], %s137
          %s139 = smul.addr %s28, 128
          %s140 = scalar_lea.hbm %s2, %s139
          %s142 = sshll.u32 [#allocation7], 4
          %s143 = int_to_ptr.vmem [resolvable:$true] %s142
          %145 = dma.hbm_to_vmem [thread:$0]  %s140, 128, %s143, [#allocation8]
        $region20: #{tpu_custom_call.1} parent=11 // pred_fallthru
          _
      $region12: #{tpu_custom_call.1} parent=5 // pred_fallthru
        _
      %p146 = scmp.lt.s32.totalorder %s18, 2
      // Predicated region
      $region21: #{tpu_custom_call.1} parent=5 // pred_check
        %p147 = pneg %p146
      $region22: #{tpu_custom_call.1} parent=5 // pred_check_branch
        %149 = sbr.rel (%p147) target = $region24
      $region23: #{tpu_custom_call.1} parent=5 // pred_region
        _
      $region24: #{tpu_custom_call.1} parent=5 // pred_fallthru
        _
      %p150 = scmp.le.s32.totalorder 1, %s18
      %p151 = scmp.lt.s32.totalorder %s18, 3
      %p152 = pnand %p150, %p151
      %p153 = pneg %p152
      // Predicated region
      $region25: #{tpu_custom_call.1} parent=5 // pred_check
        _
      $region26: #{tpu_custom_call.1} parent=5 // pred_check_branch
        %155 = sbr.rel (%p152) target = $region28
      $region27: #{tpu_custom_call.1} parent=5 // pred_region
        %s156 = ssub.s32 %s18, 1
        // Predicated region
        $region29: #{tpu_custom_call.1} parent=27 // pred_check
          %p157 = pneg %p51
        $region30: #{tpu_custom_call.1} parent=27 // pred_check_branch
          %159 = sbr.rel (%p157) target = $region32
        $region31: #{tpu_custom_call.1} parent=27 // pred_region
          %160 = dma.done [#allocation5], 1024
        $region32: #{tpu_custom_call.1} parent=27 // pred_fallthru
          _
        // Predicated region
        $region33: #{tpu_custom_call.1} parent=27 // pred_check
          %p161 = pneg %p77
        $region34: #{tpu_custom_call.1} parent=27 // pred_check_branch
          %163 = sbr.rel (%p161) target = $region36
        $region35: #{tpu_custom_call.1} parent=27 // pred_region
          %164 = dma.done [#allocation8], 128
        $region36: #{tpu_custom_call.1} parent=27 // pred_fallthru
          _
        %p165 = pneg %p51
        %p166 = pneg %p48
        %p167 = pneg %p77
        %p168 = pneg %p74
        %p169 = pneg %p105
        %p170 = pneg %p102
        %s171 = sand.u32 %s92, 1
        %s172 = scalar_lea.sflag [#allocation6], %s171
        %s173 = sand.u32 %s92, 1
        %s174 = smul.addr %s173, 8
        %s175 = scalar_lea.vmem [#allocation9], %s174
        %s176 = smul.u32 %s27, 8
        %s177 = smul.u32 %s28, 8
        %s178 = sadd.s32 %s176, %s177
        %s179 = sadd.s32 %s178, 0
        %s180 = sld [smem:[#allocation3 + %s179]]
        %p181 = scmp.gt.s32.totalorder %s180, 0
        %s182 = scalar_select %p181, %s180, 0
        %p183 = scmp.lt.s32.totalorder %s182, 63
        %s184 = scalar_select %p183, %s182, 63
        %s185 = scalar_lea.vmem [#allocation4], %s184
        %v186 = vld [vmem:[%s185] sm:$0x1]
        %s187 = sadd.s32 0, 1
        %s188 = sadd.s32 %s178, %s187
        %s189 = sld [smem:[#allocation3 + %s188]]
        %p190 = scmp.gt.s32.totalorder %s189, 0
        %s191 = scalar_select %p190, %s189, 0
        %p192 = scmp.lt.s32.totalorder %s191, 63
        %s193 = scalar_select %p192, %s191, 63
        %s194 = scalar_lea.vmem [#allocation4], %s193
        %v195 = vld [vmem:[%s194] sm:$0x1]
        %s196 = sadd.s32 0, 2
        %s197 = sadd.s32 %s178, %s196
        %s198 = sld [smem:[#allocation3 + %s197]]
        %p199 = scmp.gt.s32.totalorder %s198, 0
        %s200 = scalar_select %p199, %s198, 0
        %p201 = scmp.lt.s32.totalorder %s200, 63
        %s202 = scalar_select %p201, %s200, 63
        %s203 = scalar_lea.vmem [#allocation4], %s202
        %v204 = vld [vmem:[%s203] sm:$0x1]
        %s205 = sadd.s32 0, 3
        %s206 = sadd.s32 %s178, %s205
        %s207 = sld [smem:[#allocation3 + %s206]]
        %p208 = scmp.gt.s32.totalorder %s207, 0
        %s209 = scalar_select %p208, %s207, 0
        %p210 = scmp.lt.s32.totalorder %s209, 63
        %s211 = scalar_select %p210, %s209, 63
        %s212 = scalar_lea.vmem [#allocation4], %s211
        %v213 = vld [vmem:[%s212] sm:$0x1]
        %s214 = sadd.s32 0, 4
        %s215 = sadd.s32 %s178, %s214
        %s216 = sld [smem:[#allocation3 + %s215]]
        %p217 = scmp.gt.s32.totalorder %s216, 0
        %s218 = scalar_select %p217, %s216, 0
        %p219 = scmp.lt.s32.totalorder %s218, 63
        %s220 = scalar_select %p219, %s218, 63
        %s221 = scalar_lea.vmem [#allocation4], %s220
        %v222 = vld [vmem:[%s221] sm:$0x1]
        %s223 = sadd.s32 0, 5
        %s224 = sadd.s32 %s178, %s223
        %s225 = sld [smem:[#allocation3 + %s224]]
        %p226 = scmp.gt.s32.totalorder %s225, 0
        %s227 = scalar_select %p226, %s225, 0
        %p228 = scmp.lt.s32.totalorder %s227, 63
        %s229 = scalar_select %p228, %s227, 63
        %s230 = scalar_lea.vmem [#allocation4], %s229
        %v231 = vld [vmem:[%s230] sm:$0x1]
        %s232 = sadd.s32 0, 6
        %s233 = sadd.s32 %s178, %s232
        %s234 = sld [smem:[#allocation3 + %s233]]
        %p235 = scmp.gt.s32.totalorder %s234, 0
        %s236 = scalar_select %p235, %s234, 0
        %p237 = scmp.lt.s32.totalorder %s236, 63
        %s238 = scalar_select %p237, %s236, 63
        %s239 = scalar_lea.vmem [#allocation4], %s238
        %v240 = vld [vmem:[%s239] sm:$0x1]
        %s241 = sadd.s32 0, 7
        %s242 = sadd.s32 %s178, %s241
        %s243 = sld [smem:[#allocation3 + %s242]]
        %p244 = scmp.gt.s32.totalorder %s243, 0
        %s245 = scalar_select %p244, %s243, 0
        %p246 = scmp.lt.s32.totalorder %s245, 63
        %s247 = scalar_select %p246, %s245, 63
        %s248 = scalar_lea.vmem [#allocation4], %s247
        %v249 = vld [vmem:[%s248] sm:$0x1]
        %v251 = vrot.slane %v195, 7
        %v254 = vrot.slane %v204, 6
        %v257 = vrot.slane %v213, 5
        %v260 = vrot.slane %v222, 4
        %v263 = vrot.slane %v231, 3
        %v266 = vrot.slane %v240, 2
        %v269 = vrot.slane %v249, 1
        %vm271 = vcmask 1040384
        %v272 = vsel %vm271, %v186, %v251
        %vm273 = vcmask 1041408
        %v274 = vsel %vm273, %v272, %v254
        %vm275 = vcmask 1042432
        %v276 = vsel %vm275, %v274, %v257
        %vm277 = vcmask 1043456
        %v278 = vsel %vm277, %v276, %v260
        %vm279 = vcmask 1044480
        %v280 = vsel %vm279, %v278, %v263
        %vm281 = vcmask 1045504
        %v282 = vsel %vm281, %v280, %v266
        %vm283 = vcmask 1046528
        %v284 = vsel %vm283, %v282, %v269
        %v285 = vld [vmem:[#allocation7] sm:$0xff]
        %v286 = vadd.f32 %v284, %v285
        %287 = vst [vmem:[%s175] sm:$0xff] %v286
        %s288 = sand.u32 %s92, 1
        %s289 = scalar_lea.sflag [#allocation6], %s288
        %s290 = sand.u32 %s92, 1
        %s291 = smul.addr %s290, 8
        %s292 = scalar_lea.vmem [#allocation9], %s291
        // Predicated region
        $region37: #{tpu_custom_call.1} parent=27 // pred_check
          %p293 = pneg %p102
        $region38: #{tpu_custom_call.1} parent=27 // pred_check_branch
          %295 = sbr.rel (%p293) target = $region40
        $region39: #{tpu_custom_call.1} parent=27 // pred_region
          %s297 = ssub.s32 128, 128
          %298 = vsyncadd %s289, %s297
          %s299 = sadd.s32 %s28, %s27
          %s300 = smul.addr %s299, 128
          %s301 = scalar_lea.hbm %s3, %s300
          %s303 = sshll.u32 %s292, 4
          %s304 = int_to_ptr.vmem [resolvable:$true] %s303
          %306 = dma.vmem_to_hbm [thread:$0]  %s304, 128, %s301, %s289
        $region40: #{tpu_custom_call.1} parent=27 // pred_fallthru
          _
      $region28: #{tpu_custom_call.1} parent=5 // pred_fallthru
        _
      %p307 = scmp.le.s32.totalorder 2, %s18
      // Predicated region
      $region41: #{tpu_custom_call.1} parent=5 // pred_check
        %p308 = pneg %p307
      $region42: #{tpu_custom_call.1} parent=5 // pred_check_branch
        %310 = sbr.rel (%p308) target = $region44
      $region43: #{tpu_custom_call.1} parent=5 // pred_region
        %s311 = ssub.s32 %s18, 2
        // Predicated region
        $region45: #{tpu_custom_call.1} parent=43 // pred_check
          %p312 = pneg %p108
        $region46: #{tpu_custom_call.1} parent=43 // pred_check_branch
          %314 = sbr.rel (%p312) target = $region48
        $region47: #{tpu_custom_call.1} parent=43 // pred_region
          %s315 = sand.u32 %s93, 1
          %s316 = scalar_lea.sflag [#allocation6], %s315
          %s317 = sand.u32 %s93, 1
          %s318 = smul.addr %s317, 8
          %s319 = scalar_lea.vmem [#allocation9], %s318
          %320 = dma.done %s316, 128
        $region48: #{tpu_custom_call.1} parent=43 // pred_fallthru
          _
      $region44: #{tpu_custom_call.1} parent=5 // pred_fallthru
        _
    $region6: #{tpu_custom_call.1} parent=1 // loop_footer
      %s22 = sadd.s32 1, %s18
    $region7: #{tpu_custom_call.1} parent=1 // loop_footer_branch
      %17 = sbr.rel target = $region3
    $region8: #{tpu_custom_call.1} parent=1 // loop_exit
      _
    %321 = vsyncpa [#allocation5], 1
    %s322 = scalar_lea.sflag [#allocation5], 1
    %323 = vsyncpa %s322, 1
    %324 = vsyncpa [#allocation8], 1
    %325 = vsyncpa [#allocation6], 1
    %s326 = scalar_lea.sflag [#allocation6], 1
    %327 = vsyncpa %s326, 1

</llo_original>
